<compile_context>
chip_gen: v6e
topology: v6e:2x2x1
jax: 0.10.0
libtpu: 0.0.40
codegen_flags: <defaults>
</compile_context>

<pallas_src>
import functools

import jax
import jax.numpy as jnp
from jax.experimental import pallas as pl
from jax.experimental.pallas import tpu as pltpu


def _round_up(x, m):
    return ((x + m - 1) // m) * m


def _num_tensorcores():
    """Best-effort TensorCore count of the local device (2 on v7x-class chips)."""
    try:
        d = jax.devices()[0]
        for attr in ("num_cores", "core_count"):
            v = getattr(d, attr, None)
            if isinstance(v, int) and v > 0:
                return min(v, 2)
    except Exception:
        pass
    return 1


def _vmem_limit_bytes():
    """Scoped-VMEM limit: ~3/4 of physical (96 MiB on v5e/v6e, 48 MiB on v7x)."""
    try:
        cap = int(pltpu.get_tpu_info().vmem_capacity_bytes)
    except Exception:
        cap = 64 * 1024 * 1024  # conservative (v7x-sized) fallback
    return max(16 * 1024 * 1024, (cap * 3) // 4)


def graph_emb_kernel(*refs, gdim, n_nodes, tile_n, tiles_per_part, fuse_gate):
    if fuse_gate:
        h_ref, wf_ref, bf_ref, batch_ref, out_ref = refs
        gate_ref = None
    else:
        h_ref, wf_ref, bf_ref, gate_ref, batch_ref, out_ref = refs

    # Zero the resident per-partition accumulator on the first node tile.
    @pl.when(pl.program_id(1) == 0)
    def _():
        out_ref[...] = jnp.zeros_like(out_ref)

    # Global row offset of this (unclamped) tile; used for remainder masking.
    tile_idx = pl.program_id(0) * tiles_per_part + pl.program_id(1)
    row0 = tile_idx * tile_n

    h_in = h_ref[...]                              # [TN, ndim], incoming dtype
    h_bf = h_in.astype(jnp.bfloat16)

    # Fused linear: [TN, ndim](bf16) @ [ndim, P](bf16) -> f32, + f32 bias.
    fused = (
        jnp.dot(h_bf, wf_ref[...], preferred_element_type=jnp.float32)
        + bf_ref[...]
    )                                              # [TN, P] f32

    if fuse_gate:
        # Gate logit rides in the otherwise-padded lane `gdim` of the fused matmul.
        g = jax.nn.sigmoid(fused[:, gdim:gdim + 1])            # [TN, 1]
    else:
        # gdim % 128 == 0: keep P == gdim, compute the gate as a VPU/XLU
        # row-reduction over the small ndim axis instead of burning an extra
        # 128-lane MXU tile.
        ndim = h_in.shape[1]
        gp = gate_ref[...]                                      # [1, ndim+1] f32
        wg = gp[:, :ndim]                                       # [1, ndim]
        bg = gp[:, ndim:ndim + 1]                               # [1, 1]
        logit = jnp.sum(h_in.astype(jnp.float32) * wg, axis=1, keepdims=True) + bg
        g = jax.nn.sigmoid(logit)                               # [TN, 1]

    h_g = fused * g                                             # [TN, P] f32

    # Mask out-of-range rows (remainder of the last tile / surplus tiles) so
    # garbage in the padded VMEM region can never reach the accumulator.
    row_ids = row0 + jax.lax.broadcasted_iota(jnp.int32, (tile_n, 1), 0)
    h_g = jnp.where(row_ids < n_nodes, h_g, 0.0)

    # scatter('add') for this tile as a one-hot MXU matmul.
    batch = batch_ref[...]                                      # [1, TN] int32
    graph_ids = jax.lax.broadcasted_iota(jnp.int32, (out_ref.shape[0], 1), 0)
    one_hot = (graph_ids == batch).astype(jnp.bfloat16)         # [G, TN] exact 0/1

    out_ref[...] += jnp.dot(
        one_hot, h_g.astype(jnp.bfloat16), preferred_element_type=jnp.float32
    )                                                           # [G, P] f32 accumulate


def graph_emb_gsum(h, w_f, b_f, w_g, b_g, batch, num_graphs,
                   *, tile_n=None, num_partitions=None):
    """GraphEmb(aggr='gsum') forward. Returns [num_graphs, gdim] float32."""
    N, ndim = h.shape
    gdim = w_f.shape[1]
    h_bytes = jnp.dtype(h.dtype).itemsize

    # Lane-dense fused width.  If gdim is already a multiple of 128, don't pay
    # an extra lane tile for the gate column.
    fuse_gate = (gdim % 128) != 0
    P = _round_up(gdim + 1, 128) if fuse_gate else gdim

    # Fused weight / bias (and, for the non-fused path, the gate row).
    w_fused = jnp.zeros((ndim, P), jnp.float32).at[:, :gdim].set(w_f.astype(jnp.float32))
    b_fused = jnp.zeros((1, P), jnp.float32).at[0, :gdim].set(b_f.astype(jnp.float32))
    gate_params = None
    if fuse_gate:
        w_fused = w_fused.at[:, gdim].set(w_g.reshape(-1).astype(jnp.float32))
        b_fused = b_fused.at[0, gdim].set(b_g.reshape(-1)[0].astype(jnp.float32))
    else:
        gate_params = jnp.concatenate(
            [w_g.reshape(1, ndim).astype(jnp.float32),
             b_g.reshape(1, 1).astype(jnp.float32)], axis=1)    # [1, ndim+1]

    # Node-range partitions: "parallel" leading grid axis (uses both TCs on v7x).
    if num_partitions is None:
        num_partitions = _num_tensorcores()
    num_partitions = max(1, min(int(num_partitions), 2))

    # VMEM-budget-driven node tile size.
    vmem_limit = _vmem_limit_bytes()
    g_pad = max(num_graphs, 8)
    fixed = 2 * ndim * P * 2                       # fused weight (bf16, 2 bufs)
    fixed += 2 * 8 * P * 4                         # fused bias (f32, padded sublanes)
    fixed += 2 * 8 * _round_up(ndim + 1, 128) * 4  # gate params
    fixed += 2 * g_pad * P * 4                     # resident [G, P] f32 accumulator
    per_row = 2 * ndim * h_bytes                   # streamed h (2 bufs)
    per_row += 2 * 4                               # streamed batch ids (2 bufs)
    per_row += 2 * ndim                            # in-kernel bf16 cast of h
    per_row += (4 + 4 + 2) * P                     # fused f32 / gated f32 / gated bf16
    per_row += 4 * g_pad                           # one-hot + compare temporaries
    if tile_n is None:
        budget = (vmem_limit * 4) // 5 - fixed     # keep headroom under the limit
        tn = budget // max(per_row, 1)
    else:
        tn = int(tile_n)
    n_cap = _round_up(max(pl.cdiv(N, num_partitions), 1), 128)
    tn = min(tn, 8192, n_cap)
    tn = max(128, (tn // 128) * 128)               # (8,128) constraint: multiple of 128

    tiles_total = pl.cdiv(N, tn)
    num_partitions = min(num_partitions, tiles_total)
    tiles_per_part = pl.cdiv(tiles_total, num_partitions)
    last_block = tiles_total - 1
    grid = (num_partitions, tiles_per_part)

    # Clamp the block index so surplus tiles (when tiles don't split evenly
    # across partitions) re-read the last valid block instead of a fully
    # out-of-bounds one; their rows are masked to zero in-kernel.
    def h_map(p, i):
        return (jnp.minimum(p * tiles_per_part + i, last_block), 0)

    def batch_map(p, i):
        return (0, jnp.minimum(p * tiles_per_part + i, last_block))

    in_specs = [
        pl.BlockSpec((tn, ndim), h_map),                 # h tile (streamed, no pad/cast copy)
        pl.BlockSpec((ndim, P), lambda p, i: (0, 0)),    # fused weight (resident)
        pl.BlockSpec((1, P), lambda p, i: (0, 0)),       # fused bias (resident)
    ]
    args = [h, w_fused.astype(jnp.bfloat16), b_fused]
    if not fuse_gate:
        in_specs.append(pl.BlockSpec((1, ndim + 1), lambda p, i: (0, 0)))  # gate row
        args.append(gate_params)
    in_specs.append(pl.BlockSpec((1, tn), batch_map))    # batch tile (streamed)
    args.append(batch.astype(jnp.int32).reshape(1, N))

    cost = pl.CostEstimate(
        flops=2 * N * ndim * P + 2 * N * num_graphs * P,
        transcendentals=N,
        bytes_accessed=N * ndim * h_bytes + N * 4 + ndim * P * 2
        + num_partitions * num_graphs * P * 4,
    )

    kernel = functools.partial(
        graph_emb_kernel, gdim=gdim, n_nodes=N, tile_n=tn,
        tiles_per_part=tiles_per_part, fuse_gate=fuse_gate)

    out = pl.pallas_call(
        kernel,
        out_shape=jax.ShapeDtypeStruct((num_partitions, num_graphs, P), jnp.float32),
        grid_spec=pltpu.PrefetchScalarGridSpec(
            num_scalar_prefetch=0,
            grid=grid,
            in_specs=in_specs,
            # Per-partition resident accumulator; constant across the inner axis.
            out_specs=pl.BlockSpec((None, num_graphs, P), lambda p, i: (p, 0, 0)),
        ),
        compiler_params=pltpu.CompilerParams(
            dimension_semantics=("parallel", "arbitrary"),
            vmem_limit_bytes=vmem_limit,
        ),
        cost_estimate=cost,
    )(*args)

    # Sum the per-partition partials (no-op when num_partitions == 1) and drop pad lanes.
    return jnp.sum(out, axis=0)[:, :gdim]


def graph_emb_ref(h, w_f, b_f, w_g, b_g, batch, num_graphs):
    h_vg = h @ w_f + b_f
    g_vg = jax.nn.sigmoid(h @ w_g.reshape(-1, 1) + b_g)
    h_g = h_vg * g_vg
    return jax.ops.segment_sum(h_g, batch, num_segments=num_graphs)


if __name__ == "__main__":
    key = jax.random.PRNGKey(0)

    def make_case(k, N, ndim, gdim, num_graphs):
        k1, k2, k3, k4, k5 = jax.random.split(k, 5)
        h = jax.random.normal(k1, (N, ndim), dtype=jnp.float32)
        bound = 1.0 / jnp.sqrt(ndim)
        w_f = jax.random.uniform(k2, (ndim, gdim), jnp.float32, -bound, bound)
        b_f = jax.random.uniform(k3, (gdim,), jnp.float32, -bound, bound)
        w_g = jax.random.uniform(k4, (ndim,), jnp.float32, -bound, bound)
        b_g = jax.random.uniform(k5, (1,), jnp.float32, -bound, bound)
        # Sorted node -> graph assignment (PyG-style batching), remainder to last graph.
        per = N // num_graphs
        batch = jnp.minimum(jnp.arange(N, dtype=jnp.int32) // per, num_graphs - 1)
        return h, w_f, b_f, w_g, b_g, batch

    k1, k2 = jax.random.split(key)

    # Case 1: gdim not a multiple of 128 -> fused gate-column path.
    args1 = make_case(k1, 64, 32, 16, 4)
    out1 = graph_emb_gsum(*args1, 4)
    jax.block_until_ready(out1)
    ref1 = graph_emb_ref(*args1, 4)
    assert out1.shape == (4, 16)
    # bf16 MXU operands -> ~0.4% relative rounding on the feature path.
    assert jnp.allclose(out1, ref1, atol=5e-2, rtol=5e-2)

    # Case 2: gdim % 128 == 0 -> separate VPU gate path; N not a multiple of the
    # tile size exercises the in-kernel remainder masking.
    args2 = make_case(k2, 200, 32, 128, 5)
    out2 = graph_emb_gsum(*args2, 5)
    jax.block_until_ready(out2)
    ref2 = graph_emb_ref(*args2, 5)
    assert out2.shape == (5, 128)
    assert jnp.allclose(out2, ref2, atol=5e-2, rtol=5e-2)

    print("KERNEL_OK")
</pallas_src>

<mosaic_0001>
module attributes {stable_mosaic.version = 11 : i64} {
  func.func @graph_emb_kernel(%arg0: i32, %arg1: i32, %arg2: memref<128x32xf32, #tpu.memory_space<vmem>>, %arg3: memref<32x128xbf16, #tpu.memory_space<vmem>>, %arg4: memref<1x128xf32, #tpu.memory_space<vmem>>, %arg5: memref<1x128xi32, #tpu.memory_space<vmem>>, %arg6: memref<1x4x128xf32, #tpu.memory_space<vmem>>) attributes {dimension_semantics = [#tpu.dimension_semantics<parallel>, #tpu.dimension_semantics<arbitrary>], iteration_bounds = array<i64: 1, 1>, scalar_prefetch = 0 : i64, scratch_operands = 0 : i64, tpu.core_type = #tpu.core_type<tc>, window_params = [{transform_indices = @transform_0, window_bounds = array<i64: 128, 32>}, {pipeline_mode = #tpu.pipeline_mode<synchronous>, transform_indices = @transform_1, window_bounds = array<i64: 32, 128>}, {pipeline_mode = #tpu.pipeline_mode<synchronous>, transform_indices = @transform_2, window_bounds = array<i64: 1, 128>}, {transform_indices = @transform_3, window_bounds = array<i64: 1, 128>}, {transform_indices = @transform_4, window_bounds = array<i64: 1, 4, 128>}]} {
    %c0_i32 = arith.constant 0 : i32
    %0 = arith.cmpi eq, %arg1, %c0_i32 : i32
    %1 = arith.extui %0 : i1 to i32
    %c0_i32_0 = arith.constant 0 : i32
    %2 = arith.cmpi ne, %1, %c0_i32_0 : i32
    scf.if %2 {
      %cst_17 = arith.constant 0.000000e+00 : f32
      %46 = vector.broadcast %cst_17 : f32 to vector<4x128xf32>
      %c0_18 = arith.constant 0 : index
      %c0_19 = arith.constant 0 : index
      %c0_20 = arith.constant 0 : index
      %47 = vector.load %arg6[%c0_18, %c0_19, %c0_20] : memref<1x4x128xf32, #tpu.memory_space<vmem>>, vector<1x4x128xf32>
      %48 = vector.shape_cast %47 : vector<1x4x128xf32> to vector<4x128xf32>
      %49 = vector.shape_cast %46 : vector<4x128xf32> to vector<1x4x128xf32>
      tpu.vector_store %arg6[%c0_18, %c0_19, %c0_20], %49 {strides = array<i32>} : memref<1x4x128xf32, #tpu.memory_space<vmem>>, vector<1x4x128xf32>,
    } else {
    }
    %c1_i32 = arith.constant 1 : i32
    %3 = arith.muli %arg0, %c1_i32 : i32
    %4 = arith.addi %3, %arg1 : i32
    %c128_i32 = arith.constant 128 : i32
    %5 = arith.muli %4, %c128_i32 : i32
    %c0 = arith.constant 0 : index
    %c0_1 = arith.constant 0 : index
    %6 = vector.load %arg2[%c0, %c0_1] : memref<128x32xf32, #tpu.memory_space<vmem>>, vector<128x32xf32>
    %7 = arith.truncf %6 : vector<128x32xf32> to vector<128x32xbf16>
    %c0_2 = arith.constant 0 : index
    %c0_3 = arith.constant 0 : index
    %8 = vector.load %arg3[%c0_2, %c0_3] : memref<32x128xbf16, #tpu.memory_space<vmem>>, vector<32x128xbf16>
    %cst = arith.constant dense<0.000000e+00> : vector<128x128xf32>
    %9 = tpu.matmul %7, %8, %cst {dimension_numbers = #tpu.dot_dimension_numbers<[1], [0], [0], [1], [0, 0, 1, 1], [], []>} : vector<128x32xbf16>, vector<32x128xbf16>, vector<128x128xf32> -> vector<128x128xf32>
    %c0_4 = arith.constant 0 : index
    %c0_5 = arith.constant 0 : index
    %10 = vector.load %arg4[%c0_4, %c0_5] : memref<1x128xf32, #tpu.memory_space<vmem>>, vector<1x128xf32>
    %11 = vector.broadcast %10 : vector<1x128xf32> to vector<128x128xf32>
    %12 = arith.addf %9, %11 : vector<128x128xf32>
    %13 = vector.extract_strided_slice %12 {offsets = [0, 16], sizes = [128, 1], strides = [1, 1]} : vector<128x128xf32> to vector<128x1xf32>
    %14 = arith.negf %13 : vector<128x1xf32>
    %15 = math.exp %14 : vector<128x1xf32>
    %cst_6 = arith.constant 1.000000e+00 : f32
    %16 = vector.broadcast %cst_6 : f32 to vector<128x1xf32>
    %17 = arith.addf %16, %15 : vector<128x1xf32>
    %18 = arith.divf %16, %17 : vector<128x1xf32>
    %19 = vector.broadcast %18 : vector<128x1xf32> to vector<128x128xf32>
    %20 = arith.mulf %12, %19 : vector<128x128xf32>
    %21 = tpu.iota {dimensions = array<i32: 0>} : vector<128x1xi32>
    %22 = vector.broadcast %5 : i32 to vector<128x1xi32>
    %23 = arith.addi %22, %21 : vector<128x1xi32>
    %c64_i32 = arith.constant 64 : i32
    %24 = vector.broadcast %c64_i32 : i32 to vector<128x1xi32>
    %25 = arith.cmpi slt, %23, %24 : vector<128x1xi32>
    %cst_7 = arith.constant 0.000000e+00 : f32
    %26 = vector.shape_cast %25 : vector<128x1xi1> to vector<128x1xi1>
    %27 = vector.broadcast %26 : vector<128x1xi1> to vector<128x128xi1>
    %28 = vector.broadcast %cst_7 : f32 to vector<128x128xf32>
    %29 = arith.select %27, %20, %28 : vector<128x128xi1>, vector<128x128xf32>
    %c0_8 = arith.constant 0 : index
    %c0_9 = arith.constant 0 : index
    %30 = vector.load %arg5[%c0_8, %c0_9] : memref<1x128xi32, #tpu.memory_space<vmem>>, vector<1x128xi32>
    %31 = tpu.iota {dimensions = array<i32: 0>} : vector<4x1xi32>
    %32 = vector.broadcast %31 : vector<4x1xi32> to vector<4x128xi32>
    %33 = vector.broadcast %30 : vector<1x128xi32> to vector<4x128xi32>
    %34 = arith.cmpi eq, %32, %33 : vector<4x128xi32>
    %35 = arith.extui %34 : vector<4x128xi1> to vector<4x128xi32>
    %36 = arith.sitofp %35 : vector<4x128xi32> to vector<4x128xf32>
    %37 = arith.truncf %36 : vector<4x128xf32> to vector<4x128xbf16>
    %c0_10 = arith.constant 0 : index
    %c0_11 = arith.constant 0 : index
    %c0_12 = arith.constant 0 : index
    %38 = vector.load %arg6[%c0_10, %c0_11, %c0_12] : memref<1x4x128xf32, #tpu.memory_space<vmem>>, vector<1x4x128xf32>
    %39 = vector.shape_cast %38 : vector<1x4x128xf32> to vector<4x128xf32>
    %40 = arith.truncf %29 : vector<128x128xf32> to vector<128x128xbf16>
    %cst_13 = arith.constant dense<0.000000e+00> : vector<4x128xf32>
    %41 = tpu.matmul %37, %40, %cst_13 {dimension_numbers = #tpu.dot_dimension_numbers<[1], [0], [0], [1], [0, 0, 1, 1], [], []>} : vector<4x128xbf16>, vector<128x128xbf16>, vector<4x128xf32> -> vector<4x128xf32>
    %42 = arith.addf %39, %41 : vector<4x128xf32>
    %c0_14 = arith.constant 0 : index
    %c0_15 = arith.constant 0 : index
    %c0_16 = arith.constant 0 : index
    %43 = vector.load %arg6[%c0_14, %c0_15, %c0_16] : memref<1x4x128xf32, #tpu.memory_space<vmem>>, vector<1x4x128xf32>
    %44 = vector.shape_cast %43 : vector<1x4x128xf32> to vector<4x128xf32>
    %45 = vector.shape_cast %42 : vector<4x128xf32> to vector<1x4x128xf32>
    tpu.vector_store %arg6[%c0_14, %c0_15, %c0_16], %45 {strides = array<i32>} : memref<1x4x128xf32, #tpu.memory_space<vmem>>, vector<1x4x128xf32>,
    return
  }
  func.func @transform_0(%arg0: i32, %arg1: i32) -> (i32, i32) {
    %c1_i32 = arith.constant 1 : i32
    %0 = arith.muli %arg0, %c1_i32 : i32
    %1 = arith.addi %0, %arg1 : i32
    %c0_i32 = arith.constant 0 : i32
    %2 = arith.minsi %1, %c0_i32 : i32
    %c0_i32_0 = arith.constant 0 : i32
    %c0_i32_1 = arith.constant 0 : i32
    return %2, %c0_i32_0 : i32, i32
  }
  func.func @transform_1(%arg0: i32, %arg1: i32) -> (i32, i32) {
    %c0_i32 = arith.constant 0 : i32
    %c0_i32_0 = arith.constant 0 : i32
    %c0_i32_1 = arith.constant 0 : i32
    return %c0_i32, %c0_i32_0 : i32, i32
  }
  func.func @transform_2(%arg0: i32, %arg1: i32) -> (i32, i32) {
    %c0_i32 = arith.constant 0 : i32
    %c0_i32_0 = arith.constant 0 : i32
    %c0_i32_1 = arith.constant 0 : i32
    return %c0_i32, %c0_i32_0 : i32, i32
  }
  func.func @transform_3(%arg0: i32, %arg1: i32) -> (i32, i32) {
    %c1_i32 = arith.constant 1 : i32
    %0 = arith.muli %arg0, %c1_i32 : i32
    %1 = arith.addi %0, %arg1 : i32
    %c0_i32 = arith.constant 0 : i32
    %2 = arith.minsi %1, %c0_i32 : i32
    %c0_i32_0 = arith.constant 0 : i32
    %c0_i32_1 = arith.constant 0 : i32
    return %c0_i32_0, %2 : i32, i32
  }
  func.func @transform_4(%arg0: i32, %arg1: i32) -> (i32, i32, i32) {
    %c0_i32 = arith.constant 0 : i32
    %c0_i32_0 = arith.constant 0 : i32
    %c0_i32_1 = arith.constant 0 : i32
    return %arg0, %c0_i32, %c0_i32_0 : i32, i32, i32
  }
}

</mosaic_0001>

<llo_original>
// kernel: tpu_custom_call.1
$region0: #{tpu_custom_call.1}
  #allocation0 [shape = 'u32[]', space=smem, size = 0x4, offset = 0x4, fixed_abs, tag = 'smem constant byte address 0x4 - core index']
  #allocation1 [shape = 'u32[144,128]{1,0:T(1,128)}', space=vmem, size = 0x12000, scoped, tag = 'internal scratch']
  %s0 = inlined_call_operand.vmem [shape: f32[64,32], index: 0, kind: input, shape index: {}]
  %s1 = inlined_call_operand.vmem [shape: bf16[32,128], index: 1, kind: input, shape index: {}]
  %s2 = inlined_call_operand.vmem [shape: f32[1,128], index: 2, kind: input, shape index: {}]
  %s3 = inlined_call_operand.vmem [shape: s32[1,64], index: 3, kind: input, shape index: {}]
  %s4 = inlined_call_operand.hbm [shape: f32[1,4,128], index: 4, kind: output, shape index: {}]
  %s5 = sld [smem:[#allocation0]]
  $region30: #{tpu_custom_call.1} parent=0
    _
  %s7 = ssub.s32 1, %s5
  %s8 = scalar_select 0, %s7, %s5
  $region1: #{tpu_custom_call.1} parent=0
    #allocation2 [shape = 'u8[2048]{0}', space=vmem, size = 0x800, scoped, tag = 'output window, operand 0, single buffered']
    #allocation3 [shape = 's32[1]{0}', space=sflag, size = 0x4, scoped, tag = 'scoped memory for tpu_custom_call.1']
    %9 = vsyncpa [#allocation3], 0
    // Predicated region
    $region2: #{tpu_custom_call.1} parent=1 // pred_check
      _
    $region3: #{tpu_custom_call.1} parent=1 // pred_check_branch
      %11 = sbr.rel (0) target = $region5
    $region4: #{tpu_custom_call.1} parent=1 // pred_region
      %s12 = sadd.s32 0, 0
      %p13 = scmp.lt.s32.totalorder %s12, 0
      %s14 = scalar_select %p13, %s12, 0
      %s15 = smul.u32 16, %s14
      %s16 = ssub.s32 8, %s15
      %s17 = smul.u32 128, %s16
      %p18 = scmp.lt.s32.totalorder %s15, 7
      %s19 = scalar_select %p18, %s15, 7
      %s20 = smul.addr %s19, 8
      %s21 = scalar_lea.vmem %s0, %s20
      %s22 = sadd.s32 0, 0
      %p23 = scmp.lt.s32.totalorder %s22, 0
      %s24 = scalar_select %p23, %s22, 0
      %s25 = smul.u32 16, %s24
      %s26 = ssub.s32 8, %s25
      %s27 = smul.u32 128, %s26
    $region5: #{tpu_custom_call.1} parent=1 // pred_fallthru
      _
    // Predicated region
    $region6: #{tpu_custom_call.1} parent=1 // pred_check
      _
    $region7: #{tpu_custom_call.1} parent=1 // pred_check_branch
      %29 = sbr.rel (0) target = $region9
    $region8: #{tpu_custom_call.1} parent=1 // pred_region
      _
    $region9: #{tpu_custom_call.1} parent=1 // pred_fallthru
      _
    // Predicated region
    $region10: #{tpu_custom_call.1} parent=1 // pred_check
      _
    $region11: #{tpu_custom_call.1} parent=1 // pred_check_branch
      %31 = sbr.rel (0) target = $region13
    $region12: #{tpu_custom_call.1} parent=1 // pred_region
      _
    $region13: #{tpu_custom_call.1} parent=1 // pred_fallthru
      _
    // Predicated region
    $region14: #{tpu_custom_call.1} parent=1 // pred_check
      _
    $region15: #{tpu_custom_call.1} parent=1 // pred_check_branch
      %33 = sbr.rel (0) target = $region17
    $region16: #{tpu_custom_call.1} parent=1 // pred_region
      %s34 = sadd.s32 0, 0
      %p35 = scmp.lt.s32.totalorder %s34, 0
      %s36 = scalar_select %p35, %s34, 0
      %p37 = scmp.lt.s32.totalorder %s36, 0
      %s38 = scalar_select %p37, %s36, 0
      %s39 = scalar_lea.vmem %s3, %s38
      %s40 = sadd.s32 0, 0
      %p41 = scmp.lt.s32.totalorder %s40, 0
      %s42 = scalar_select %p41, %s40, 0
    $region17: #{tpu_custom_call.1} parent=1 // pred_fallthru
      _
    %s43 = sadd.s32 0, 0
    %p44 = scmp.lt.s32.totalorder %s43, 0
    %s45 = scalar_select %p44, %s43, 0
    %s46 = smul.u32 16, %s45
    %s47 = ssub.s32 8, %s46
    %s48 = smul.u32 128, %s47
    %p49 = scmp.lt.s32.totalorder %s46, 7
    %s50 = scalar_select %p49, %s46, 7
    %s51 = smul.addr %s50, 8
    %s52 = scalar_lea.vmem %s0, %s51
    %s53 = sadd.s32 0, 0
    %p54 = scmp.lt.s32.totalorder %s53, 0
    %s55 = scalar_select %p54, %s53, 0
    %p56 = scmp.lt.s32.totalorder %s55, 0
    %s57 = scalar_select %p56, %s55, 0
    %s58 = scalar_lea.vmem %s3, %s57
    %s59 = sadd.s32 0, 0
    %p60 = scmp.lt.s32.totalorder %s59, 0
    %s61 = scalar_select %p60, %s59, 0
    %s62 = smul.u32 16, %s61
    %s63 = ssub.s32 8, %s62
    %s64 = smul.u32 128, %s63
    %p65 = scmp.lt.s32.totalorder %s62, 7
    %s66 = scalar_select %p65, %s62, 7
    %s67 = smul.addr %s66, 8
    %s68 = scalar_lea.vmem %s0, %s67
    %s69 = sadd.s32 0, 0
    %p70 = scmp.lt.s32.totalorder %s69, 0
    %s71 = scalar_select %p70, %s69, 0
    %s72 = smul.u32 16, %s71
    %s73 = ssub.s32 8, %s72
    %s74 = smul.u32 128, %s73
    %s75 = sadd.s32 0, 0
    %p76 = scmp.lt.s32.totalorder %s75, 0
    %s77 = scalar_select %p76, %s75, 0
    %p78 = scmp.lt.s32.totalorder %s77, 0
    %s79 = scalar_select %p78, %s77, 0
    %s80 = scalar_lea.vmem %s3, %s79
    %s81 = sadd.s32 0, 0
    %p82 = scmp.lt.s32.totalorder %s81, 0
    %s83 = scalar_select %p82, %s81, 0
    %p85 = scmp.eq.s32.totalorder 0, 0
    // Predicated region
    $region18: #{tpu_custom_call.1} parent=1 // pred_check
      %p86 = pneg %p85
    $region19: #{tpu_custom_call.1} parent=1 // pred_check_branch
      %88 = sbr.rel (%p86) target = $region21
    $region20: #{tpu_custom_call.1} parent=1 // pred_region
      %89 = vst [vmem:[#allocation2] sm:$0xf] 0.0
    $region21: #{tpu_custom_call.1} parent=1 // pred_fallthru
      _
    %s90 = sadd.s32 0, 0
    %s91 = smul.u32 %s90, 128
    %v92 = vld [vmem:[%s68] sm:$0xff]
    %v93 = vld [vmem:[%s68 + $0x8] sm:$0xff]
    %v94 = vld [vmem:[%s68 + $0x10] sm:$0xff]
    %v95 = vld [vmem:[%s68 + $0x18] sm:$0xff]
    %v96 = vld [vmem:[%s68 + $0x20] sm:$0xff]
    %v97 = vld [vmem:[%s68 + $0x28] sm:$0xff]
    %v98 = vld [vmem:[%s68 + $0x30] sm:$0xff]
    %v99 = vld [vmem:[%s68 + $0x38] sm:$0xff]
    %v100 = vld [vmem:[%s68 + $0x40] sm:$0xff]
    %v101 = vld [vmem:[%s68 + $0x48] sm:$0xff]
    %v102 = vld [vmem:[%s68 + $0x50] sm:$0xff]
    %v103 = vld [vmem:[%s68 + $0x58] sm:$0xff]
    %v104 = vld [vmem:[%s68 + $0x60] sm:$0xff]
    %v105 = vld [vmem:[%s68 + $0x68] sm:$0xff]
    %v106 = vld [vmem:[%s68 + $0x70] sm:$0xff]
    %v107 = vld [vmem:[%s68 + $0x78] sm:$0xff]
    %v108 = vpack.c.bf16 %v93, %v92
    %v109 = vpack.c.bf16 %v95, %v94
    %v110 = vpack.c.bf16 %v97, %v96
    %v111 = vpack.c.bf16 %v99, %v98
    %v112 = vpack.c.bf16 %v101, %v100
    %v113 = vpack.c.bf16 %v103, %v102
    %v114 = vpack.c.bf16 %v105, %v104
    %v115 = vpack.c.bf16 %v107, %v106
    %v116 = vld [vmem:[%s1] sm:$0xf]
    %v117 = vld [vmem:[%s1 + $0x4] sm:$0xf]
    %v118 = vld [vmem:[%s1 + $0x8] sm:$0xf]
    %v119 = vld [vmem:[%s1 + $0xc] sm:$0xf]
    %v120 = vld [vmem:[%s2] sm:$0x1]
    %v122 = vlaneseq
    %v123 = vshrl.u32 %v122, 7
    %v124 = vsub.s32 0, %v123
    %v125 = vrot.slane %v120, %v124
    %v131 = vunpack.c.l.b16 %v116
    %v132 = vunpack.c.l.b16 %v117
    %v133 = vunpack.c.l.b16 %v118
    %v134 = vunpack.c.l.b16 %v119
    %v135 = vpack.c.b16 %v132, %v131
    %v136 = vpack.c.b16 %v134, %v133
    %vm139 = vcmask 261120
    %v141 = vsel %vm139, %v108, 0
    %v144 = vsel %vm139, %v109, 0
    %v147 = vsel %vm139, %v110, 0
    %v150 = vsel %vm139, %v111, 0
    %v153 = vsel %vm139, %v112, 0
    %v156 = vsel %vm139, %v113, 0
    %v159 = vsel %vm139, %v114, 0
    %v162 = vsel %vm139, %v115, 0
    %164 = vmatprep.subr.bf16.mxu0 0
    %165 = vmatpush1.bf16.msra.mxu0 0
    %166 = vmatprep.subr.bf16.mxu0 0
    %167 = vmatpush1.bf16.msra.mxu0 0
    %168 = vmatprep.subr.bf16.mxu0 0
    %169 = vmatpush1.bf16.msra.mxu0 0
    %170 = vmatprep.subr.bf16.mxu0 0
    %171 = vmatpush1.bf16.msra.mxu0 0
    %172 = vmatprep.subr.bf16.mxu0 0
    %173 = vmatpush1.bf16.msra.mxu0 0
    %174 = vmatprep.subr.bf16.mxu0 0
    %175 = vmatpush1.bf16.msra.mxu0 0
    %176 = vmatprep.subr.bf16.mxu0 0
    %177 = vmatpush1.bf16.msra.mxu0 %v136
    %178 = vmatprep.subr.bf16.mxu0 0
    %179 = vmatpush1.bf16.msra.mxu0 %v135
    %180 = vmatprep.subr.bf16.mxu0 0
    %181 = vmatpush2.bf16.msra.mxu0 0
    %182 = vmatprep.subr.bf16.mxu0 0
    %183 = vmatpush2.bf16.msra.mxu0 0
    %184 = vmatprep.subr.bf16.mxu0 0
    %185 = vmatpush2.bf16.msra.mxu0 0
    %186 = vmatprep.subr.bf16.mxu0 0
    %187 = vmatpush2.bf16.msra.mxu0 0
    %188 = vmatprep.subr.bf16.mxu0 0
    %189 = vmatpush2.bf16.msra.mxu0 0
    %190 = vmatprep.subr.bf16.mxu0 0
    %191 = vmatpush2.bf16.msra.mxu0 0
    %192 = vmatprep.subr.bf16.mxu0 0
    %193 = vmatpush2.bf16.msra.mxu0 0
    %194 = vmatprep.subr.bf16.mxu0 0
    %195 = vmatpush2.bf16.msra.mxu0 0
    %196 = vmatprep.mubr.bf16.mxu0 0
    %197 = vmatmul.mubr.bf16.gmra.mxu0 %v141
    %v198 = vpop.f32.mrf.mxu0
    %v199 = vadd.f32 %v125, %v198
    %v200 = vpop.f32.mrf.mxu0
    %v201 = vpop.f32.mrf.mxu0
    %v202 = vadd.f32 %v125, %v201
    %v203 = vpop.f32.mrf.mxu0
    %204 = vmatprep.mubr.bf16.mxu0 0
    %205 = vmatmul.mubr.bf16.gmra.mxu0 %v144
    %v206 = vpop.f32.mrf.mxu0
    %v207 = vadd.f32 %v125, %v206
    %v208 = vpop.f32.mrf.mxu0
    %v209 = vpop.f32.mrf.mxu0
    %v210 = vadd.f32 %v125, %v209
    %v211 = vpop.f32.mrf.mxu0
    %212 = vmatprep.mubr.bf16.mxu0 0
    %213 = vmatmul.mubr.bf16.gmra.mxu0 %v147
    %v214 = vpop.f32.mrf.mxu0
    %v215 = vadd.f32 %v125, %v214
    %v216 = vpop.f32.mrf.mxu0
    %v217 = vpop.f32.mrf.mxu0
    %v218 = vadd.f32 %v125, %v217
    %v219 = vpop.f32.mrf.mxu0
    %220 = vmatprep.mubr.bf16.mxu0 0
    %221 = vmatmul.mubr.bf16.gmra.mxu0 %v150
    %v222 = vpop.f32.mrf.mxu0
    %v223 = vadd.f32 %v125, %v222
    %v224 = vpop.f32.mrf.mxu0
    %v225 = vpop.f32.mrf.mxu0
    %v226 = vadd.f32 %v125, %v225
    %v227 = vpop.f32.mrf.mxu0
    %228 = vmatprep.mubr.bf16.mxu0 0
    %229 = vmatmul.mubr.bf16.gmra.mxu0 %v153
    %v230 = vpop.f32.mrf.mxu0
    %v231 = vadd.f32 %v125, %v230
    %v232 = vpop.f32.mrf.mxu0
    %v233 = vpop.f32.mrf.mxu0
    %v234 = vadd.f32 %v125, %v233
    %v235 = vpop.f32.mrf.mxu0
    %236 = vmatprep.mubr.bf16.mxu0 0
    %237 = vmatmul.mubr.bf16.gmra.mxu0 %v156
    %v238 = vpop.f32.mrf.mxu0
    %v239 = vadd.f32 %v125, %v238
    %v240 = vpop.f32.mrf.mxu0
    %v241 = vpop.f32.mrf.mxu0
    %v242 = vadd.f32 %v125, %v241
    %v243 = vpop.f32.mrf.mxu0
    %244 = vmatprep.mubr.bf16.mxu0 0
    %245 = vmatmul.mubr.bf16.gmra.mxu0 %v159
    %v246 = vpop.f32.mrf.mxu0
    %v247 = vadd.f32 %v125, %v246
    %v248 = vpop.f32.mrf.mxu0
    %v249 = vpop.f32.mrf.mxu0
    %v250 = vadd.f32 %v125, %v249
    %v251 = vpop.f32.mrf.mxu0
    %252 = vmatprep.mubr.bf16.mxu0 0
    %253 = vmatmul.mubr.bf16.gmra.mxu0 %v162
    %v254 = vpop.f32.mrf.mxu0
    %v255 = vadd.f32 %v125, %v254
    %v256 = vpop.f32.mrf.mxu0
    %v257 = vpop.f32.mrf.mxu0
    %v258 = vadd.f32 %v125, %v257
    %v259 = vpop.f32.mrf.mxu0
    %260 = vdwg.mxu0
    %v261 = vxor.u32 %v199, 2147483648
    %v262 = vxor.u32 %v202, 2147483648
    %v263 = vxor.u32 %v207, 2147483648
    %v264 = vxor.u32 %v210, 2147483648
    %v265 = vxor.u32 %v215, 2147483648
    %v266 = vxor.u32 %v218, 2147483648
    %v267 = vxor.u32 %v223, 2147483648
    %v268 = vxor.u32 %v226, 2147483648
    %v269 = vxor.u32 %v231, 2147483648
    %v270 = vxor.u32 %v234, 2147483648
    %v271 = vxor.u32 %v239, 2147483648
    %v272 = vxor.u32 %v242, 2147483648
    %v273 = vxor.u32 %v247, 2147483648
    %v274 = vxor.u32 %v250, 2147483648
    %v275 = vxor.u32 %v255, 2147483648
    %v276 = vxor.u32 %v258, 2147483648
    %v277 = vmul.f32 %v261, 1.442695
    %v278 = vpow.pop %v277
    %v279 = vmul.f32 %v262, 1.442695
    %v280 = vpow.pop %v279
    %v281 = vmul.f32 %v263, 1.442695
    %v282 = vpow.pop %v281
    %v283 = vmul.f32 %v264, 1.442695
    %v284 = vpow.pop %v283
    %v285 = vmul.f32 %v265, 1.442695
    %v286 = vpow.pop %v285
    %v287 = vmul.f32 %v266, 1.442695
    %v288 = vpow.pop %v287
    %v289 = vmul.f32 %v267, 1.442695
    %v290 = vpow.pop %v289
    %v291 = vmul.f32 %v268, 1.442695
    %v292 = vpow.pop %v291
    %v293 = vmul.f32 %v269, 1.442695
    %v294 = vpow.pop %v293
    %v295 = vmul.f32 %v270, 1.442695
    %v296 = vpow.pop %v295
    %v297 = vmul.f32 %v271, 1.442695
    %v298 = vpow.pop %v297
    %v299 = vmul.f32 %v272, 1.442695
    %v300 = vpow.pop %v299
    %v301 = vmul.f32 %v273, 1.442695
    %v302 = vpow.pop %v301
    %v303 = vmul.f32 %v274, 1.442695
    %v304 = vpow.pop %v303
    %v305 = vmul.f32 %v275, 1.442695
    %v306 = vpow.pop %v305
    %v307 = vmul.f32 %v276, 1.442695
    %v308 = vpow.pop %v307
    %v309 = vadd.f32 %v278, 1.0
    %v310 = vadd.f32 %v280, 1.0
    %v311 = vadd.f32 %v282, 1.0
    %v312 = vadd.f32 %v284, 1.0
    %v313 = vadd.f32 %v286, 1.0
    %v314 = vadd.f32 %v288, 1.0
    %v315 = vadd.f32 %v290, 1.0
    %v316 = vadd.f32 %v292, 1.0
    %v317 = vadd.f32 %v294, 1.0
    %v318 = vadd.f32 %v296, 1.0
    %v319 = vadd.f32 %v298, 1.0
    %v320 = vadd.f32 %v300, 1.0
    %v321 = vadd.f32 %v302, 1.0
    %v322 = vadd.f32 %v304, 1.0
    %v323 = vadd.f32 %v306, 1.0
    %v324 = vadd.f32 %v308, 1.0
    %v325 = vrcp.pop %v309
    %v326 = vmul.f32 1.0, %v325
    %v327 = vrcp.pop %v310
    %v328 = vmul.f32 1.0, %v327
    %v329 = vrcp.pop %v311
    %v330 = vmul.f32 1.0, %v329
    %v331 = vrcp.pop %v312
    %v332 = vmul.f32 1.0, %v331
    %v333 = vrcp.pop %v313
    %v334 = vmul.f32 1.0, %v333
    %v335 = vrcp.pop %v314
    %v336 = vmul.f32 1.0, %v335
    %v337 = vrcp.pop %v315
    %v338 = vmul.f32 1.0, %v337
    %v339 = vrcp.pop %v316
    %v340 = vmul.f32 1.0, %v339
    %v341 = vrcp.pop %v317
    %v342 = vmul.f32 1.0, %v341
    %v343 = vrcp.pop %v318
    %v344 = vmul.f32 1.0, %v343
    %v345 = vrcp.pop %v319
    %v346 = vmul.f32 1.0, %v345
    %v347 = vrcp.pop %v320
    %v348 = vmul.f32 1.0, %v347
    %v349 = vrcp.pop %v321
    %v350 = vmul.f32 1.0, %v349
    %v351 = vrcp.pop %v322
    %v352 = vmul.f32 1.0, %v351
    %v353 = vrcp.pop %v323
    %v354 = vmul.f32 1.0, %v353
    %v355 = vrcp.pop %v324
    %v356 = vmul.f32 1.0, %v355
    %358 = vset.pattern.permute.xlu0 16
    %359 = vperm.xlu0 %358, %v326
    %v360 = vpop.permute.xlu0 %359
    %363 = vset.pattern.permute.xlu0 16
    %364 = vperm.xlu0 %363, %v328
    %v365 = vpop.permute.xlu0 %364
    %368 = vset.pattern.permute.xlu0 16
    %369 = vperm.xlu0 %368, %v330
    %v370 = vpop.permute.xlu0 %369
    %373 = vset.pattern.permute.xlu0 16
    %374 = vperm.xlu0 %373, %v332
    %v375 = vpop.permute.xlu0 %374
    %378 = vset.pattern.permute.xlu0 16
    %379 = vperm.xlu0 %378, %v334
    %v380 = vpop.permute.xlu0 %379
    %383 = vset.pattern.permute.xlu0 16
    %384 = vperm.xlu0 %383, %v336
    %v385 = vpop.permute.xlu0 %384
    %388 = vset.pattern.permute.xlu0 16
    %389 = vperm.xlu0 %388, %v338
    %v390 = vpop.permute.xlu0 %389
    %393 = vset.pattern.permute.xlu0 16
    %394 = vperm.xlu0 %393, %v340
    %v395 = vpop.permute.xlu0 %394
    %398 = vset.pattern.permute.xlu0 16
    %399 = vperm.xlu0 %398, %v342
    %v400 = vpop.permute.xlu0 %399
    %403 = vset.pattern.permute.xlu0 16
    %404 = vperm.xlu0 %403, %v344
    %v405 = vpop.permute.xlu0 %404
    %408 = vset.pattern.permute.xlu0 16
    %409 = vperm.xlu0 %408, %v346
    %v410 = vpop.permute.xlu0 %409
    %413 = vset.pattern.permute.xlu0 16
    %414 = vperm.xlu0 %413, %v348
    %v415 = vpop.permute.xlu0 %414
    %418 = vset.pattern.permute.xlu0 16
    %419 = vperm.xlu0 %418, %v350
    %v420 = vpop.permute.xlu0 %419
    %423 = vset.pattern.permute.xlu0 16
    %424 = vperm.xlu0 %423, %v352
    %v425 = vpop.permute.xlu0 %424
    %428 = vset.pattern.permute.xlu0 16
    %429 = vperm.xlu0 %428, %v354
    %v430 = vpop.permute.xlu0 %429
    %433 = vset.pattern.permute.xlu0 16
    %434 = vperm.xlu0 %433, %v356
    %v435 = vpop.permute.xlu0 %434
    %v437 = vmul.f32 %v199, %v360
    %v438 = vmul.f32 %v202, %v365
    %v439 = vmul.f32 %v207, %v370
    %v440 = vmul.f32 %v210, %v375
    %v441 = vmul.f32 %v215, %v380
    %v442 = vmul.f32 %v218, %v385
    %v443 = vmul.f32 %v223, %v390
    %v444 = vmul.f32 %v226, %v395
    %v445 = vmul.f32 %v231, %v400
    %v446 = vmul.f32 %v234, %v405
    %v447 = vmul.f32 %v239, %v410
    %v448 = vmul.f32 %v242, %v415
    %v449 = vmul.f32 %v247, %v420
    %v450 = vmul.f32 %v250, %v425
    %v451 = vmul.f32 %v255, %v430
    %v452 = vmul.f32 %v258, %v435
    %v453 = vlaneseq
    %v454 = vshrl.u32 %v453, 7
    %v455 = vadd.s32 %v454, 8
    %v456 = vadd.s32 %v454, 16
    %v457 = vadd.s32 %v454, 24
    %v458 = vadd.s32 %v454, 32
    %v459 = vadd.s32 %v454, 40
    %v460 = vadd.s32 %v454, 48
    %v461 = vadd.s32 %v454, 56
    %v462 = vadd.s32 %v454, 64
    %v463 = vadd.s32 %v454, 72
    %v464 = vadd.s32 %v454, 80
    %v465 = vadd.s32 %v454, 88
    %v466 = vadd.s32 %v454, 96
    %v467 = vadd.s32 %v454, 104
    %v468 = vadd.s32 %v454, 112
    %v469 = vadd.s32 %v454, 120
    %v470 = vstv %s91
    %v471 = vadd.s32 %v470, %v454
    %v472 = vadd.s32 %v470, %v455
    %v473 = vadd.s32 %v470, %v456
    %v474 = vadd.s32 %v470, %v457
    %v475 = vadd.s32 %v470, %v458
    %v476 = vadd.s32 %v470, %v459
    %v477 = vadd.s32 %v470, %v460
    %v478 = vadd.s32 %v470, %v461
    %v479 = vadd.s32 %v470, %v462
    %v480 = vadd.s32 %v470, %v463
    %v481 = vadd.s32 %v470, %v464
    %v482 = vadd.s32 %v470, %v465
    %v483 = vadd.s32 %v470, %v466
    %v484 = vadd.s32 %v470, %v467
    %v485 = vadd.s32 %v470, %v468
    %v486 = vadd.s32 %v470, %v469
    %vm487 = vcmp.lt.s32.totalorder %v471, 64
    %vm488 = vcmp.lt.s32.totalorder %v472, 64
    %vm489 = vcmp.lt.s32.totalorder %v473, 64
    %vm490 = vcmp.lt.s32.totalorder %v474, 64
    %vm491 = vcmp.lt.s32.totalorder %v475, 64
    %vm492 = vcmp.lt.s32.totalorder %v476, 64
    %vm493 = vcmp.lt.s32.totalorder %v477, 64
    %vm494 = vcmp.lt.s32.totalorder %v478, 64
    %vm495 = vcmp.lt.s32.totalorder %v479, 64
    %vm496 = vcmp.lt.s32.totalorder %v480, 64
    %vm497 = vcmp.lt.s32.totalorder %v481, 64
    %vm498 = vcmp.lt.s32.totalorder %v482, 64
    %vm499 = vcmp.lt.s32.totalorder %v483, 64
    %vm500 = vcmp.lt.s32.totalorder %v484, 64
    %vm501 = vcmp.lt.s32.totalorder %v485, 64
    %vm502 = vcmp.lt.s32.totalorder %v486, 64
    %v503 = vsel %vm487, 1, 0
    %v504 = vsel %vm488, 1, 0
    %v505 = vsel %vm489, 1, 0
    %v506 = vsel %vm490, 1, 0
    %v507 = vsel %vm491, 1, 0
    %v508 = vsel %vm492, 1, 0
    %v509 = vsel %vm493, 1, 0
    %v510 = vsel %vm494, 1, 0
    %v511 = vsel %vm495, 1, 0
    %v512 = vsel %vm496, 1, 0
    %v513 = vsel %vm497, 1, 0
    %v514 = vsel %vm498, 1, 0
    %v515 = vsel %vm499, 1, 0
    %v516 = vsel %vm500, 1, 0
    %v517 = vsel %vm501, 1, 0
    %v518 = vsel %vm502, 1, 0
    %vm519 = vcmp.eq.s32.totalorder %v503, 1
    %vm520 = vcmp.eq.s32.totalorder %v504, 1
    %vm521 = vcmp.eq.s32.totalorder %v505, 1
    %vm522 = vcmp.eq.s32.totalorder %v506, 1
    %vm523 = vcmp.eq.s32.totalorder %v507, 1
    %vm524 = vcmp.eq.s32.totalorder %v508, 1
    %vm525 = vcmp.eq.s32.totalorder %v509, 1
    %vm526 = vcmp.eq.s32.totalorder %v510, 1
    %vm527 = vcmp.eq.s32.totalorder %v511, 1
    %vm528 = vcmp.eq.s32.totalorder %v512, 1
    %vm529 = vcmp.eq.s32.totalorder %v513, 1
    %vm530 = vcmp.eq.s32.totalorder %v514, 1
    %vm531 = vcmp.eq.s32.totalorder %v515, 1
    %vm532 = vcmp.eq.s32.totalorder %v516, 1
    %vm533 = vcmp.eq.s32.totalorder %v517, 1
    %vm534 = vcmp.eq.s32.totalorder %v518, 1
    %v535 = vsel %vm519, %v437, 0.0
    %v536 = vsel %vm520, %v438, 0.0
    %v537 = vsel %vm521, %v439, 0.0
    %v538 = vsel %vm522, %v440, 0.0
    %v539 = vsel %vm523, %v441, 0.0
    %v540 = vsel %vm524, %v442, 0.0
    %v541 = vsel %vm525, %v443, 0.0
    %v542 = vsel %vm526, %v444, 0.0
    %v543 = vsel %vm527, %v445, 0.0
    %v544 = vsel %vm528, %v446, 0.0
    %v545 = vsel %vm529, %v447, 0.0
    %v546 = vsel %vm530, %v448, 0.0
    %v547 = vsel %vm531, %v449, 0.0
    %v548 = vsel %vm532, %v450, 0.0
    %v549 = vsel %vm533, %v451, 0.0
    %v550 = vsel %vm534, %v452, 0.0
    %v551 = vld [vmem:[%s80] sm:$0x1]
    %v552 = vlaneseq
    %v553 = vshrl.u32 %v552, 7
    %v554 = vsub.s32 0, %v553
    %v555 = vrot.slane %v551, %v554
    %vm556 = vcmp.eq.s32.totalorder %v454, %v555
    %v557 = vsel %vm556, 1, 0
    %v558 = vcvt.s32.f32 %v557
    %v559 = vpack.c.bf16 %v558, %v558
    %v560 = vld [vmem:[#allocation2] sm:$0xf]
    %v561 = vpack.c.bf16 %v536, %v535
    %v562 = vpack.c.bf16 %v538, %v537
    %v563 = vpack.c.bf16 %v540, %v539
    %v564 = vpack.c.bf16 %v542, %v541
    %v565 = vpack.c.bf16 %v544, %v543
    %v566 = vpack.c.bf16 %v546, %v545
    %v567 = vpack.c.bf16 %v548, %v547
    %v568 = vpack.c.bf16 %v550, %v549
    %569 = vmatprep.subr.bf16.mxu0 0
    %570 = vmatpush1.bf16.msra.mxu0 %v568
    %571 = vmatprep.subr.bf16.mxu0 0
    %572 = vmatpush1.bf16.msra.mxu0 %v567
    %573 = vmatprep.subr.bf16.mxu0 0
    %574 = vmatpush1.bf16.msra.mxu0 %v566
    %575 = vmatprep.subr.bf16.mxu0 0
    %576 = vmatpush1.bf16.msra.mxu0 %v565
    %577 = vmatprep.subr.bf16.mxu0 0
    %578 = vmatpush1.bf16.msra.mxu0 %v564
    %579 = vmatprep.subr.bf16.mxu0 0
    %580 = vmatpush1.bf16.msra.mxu0 %v563
    %581 = vmatprep.subr.bf16.mxu0 0
    %582 = vmatpush1.bf16.msra.mxu0 %v562
    %583 = vmatprep.subr.bf16.mxu0 0
    %584 = vmatpush1.bf16.msra.mxu0 %v561
    %585 = vmatprep.subr.bf16.mxu0 0
    %586 = vmatpush2.bf16.msra.mxu0 0
    %587 = vmatprep.subr.bf16.mxu0 0
    %588 = vmatpush2.bf16.msra.mxu0 0
    %589 = vmatprep.subr.bf16.mxu0 0
    %590 = vmatpush2.bf16.msra.mxu0 0
    %591 = vmatprep.subr.bf16.mxu0 0
    %592 = vmatpush2.bf16.msra.mxu0 0
    %593 = vmatprep.subr.bf16.mxu0 0
    %594 = vmatpush2.bf16.msra.mxu0 0
    %595 = vmatprep.subr.bf16.mxu0 0
    %596 = vmatpush2.bf16.msra.mxu0 0
    %597 = vmatprep.subr.bf16.mxu0 0
    %598 = vmatpush2.bf16.msra.mxu0 0
    %599 = vmatprep.subr.bf16.mxu0 0
    %600 = vmatpush2.bf16.msra.mxu0 0
    %601 = vmatprep.mubr.bf16.mxu0 0
    %602 = vmatmul.mubr.bf16.gmra.mxu0 %v559
    %v603 = vpop.f32.mrf.mxu0
    %v604 = vadd.f32 0.0, %v603
    %v605 = vpop.f32.mrf.mxu0
    %v606 = vpop.f32.mrf.mxu0
    %v607 = vpop.f32.mrf.mxu0
    %608 = vdwg.mxu0
    %v609 = vadd.f32 %v560, %v604
    %610 = vst [vmem:[#allocation2] sm:$0xf] %v609
    // Predicated region
    $region22: #{tpu_custom_call.1} parent=1 // pred_check
      _
    $region23: #{tpu_custom_call.1} parent=1 // pred_check_branch
      %612 = sbr.rel (0) target = $region25
    $region24: #{tpu_custom_call.1} parent=1 // pred_region
      %s614 = ssub.s32 64, 64
      %615 = vsyncadd [#allocation3], %s614
      %s617 = sshll.u32 [#allocation2], 4
      %s618 = int_to_ptr.vmem [resolvable:$true] %s617
      %620 = dma.vmem_to_hbm [thread:$0]  %s618, 64, %s4, [#allocation3]
    $region25: #{tpu_custom_call.1} parent=1 // pred_fallthru
      _
    // Predicated region
    $region26: #{tpu_custom_call.1} parent=1 // pred_check
      _
    $region27: #{tpu_custom_call.1} parent=1 // pred_check_branch
      %622 = sbr.rel (0) target = $region29
    $region28: #{tpu_custom_call.1} parent=1 // pred_region
      %623 = dma.done [#allocation3], 64
    $region29: #{tpu_custom_call.1} parent=1 // pred_fallthru
      _
    %624 = vsyncpa [#allocation3], 1

</llo_original>
